<compile_context>
chip_gen: v6e
topology: v6e:2x2x1
jax: 0.10.0
libtpu: 0.0.40
codegen_flags: <defaults>
</compile_context>

<pallas_src>
import functools

import jax
import jax.numpy as jnp
from jax.experimental import pallas as pl
from jax.experimental.pallas import tpu as pltpu

LANE = 128            # TPU lane width; weight feature dims are padded to this.
DEFAULT_TILE_M = 2048
NEG_INF = -1e30       # baked into padded action lanes of b3 (f32 exp -> 0.0)


def _round_up(n, m):
    return ((n + m - 1) // m) * m


def policy_mlp_kernel(x_ref, w_ref, b_ref, o_ref, *, state_pad, out_lanes):
    """One batch tile: 3 matmuls + 2 ReLUs + masked softmax, all in VMEM."""
    # f32 in HBM; cast to bf16 right before the MXU (VPU work hidden under DMA).
    x = x_ref[...].astype(jnp.bfloat16)              # (tile_m, state_pad)

    # Packed, zero-padded weights (bf16) and biases (f32).
    w1 = w_ref[0][:state_pad, :]                     # (state_pad, 128)
    w2 = w_ref[1]                                    # (128, 128)
    w3 = w_ref[2]                                    # (128, 128)
    b = b_ref[...]                                   # (8, 128) f32
    b1, b2, b3 = b[0:1, :], b[1:2, :], b[2:3, :]

    # layer1 + ReLU (bf16 MXU inputs, f32 accumulation, f32 elementwise math).
    h1 = jnp.dot(x, w1, preferred_element_type=jnp.float32) + b1
    h1 = jnp.maximum(h1, 0.0)

    # layer2 + ReLU.  Padded lanes of h1 are 0 and padded rows of w2 are 0,
    # so the full 128-wide matmul is exact.
    h2 = jnp.dot(h1.astype(jnp.bfloat16), w2,
                 preferred_element_type=jnp.float32) + b2
    h2 = jnp.maximum(h2, 0.0)

    # layer3 logits.  b3's padded lanes carry -1e30 (baked in pack_params), so
    # the action mask costs nothing here.
    logits = jnp.dot(h2.astype(jnp.bfloat16), w3,
                     preferred_element_type=jnp.float32) + b3   # (tile_m, 128)

    # Narrow to the stored lanes before the softmax; masked lanes exp() to 0.
    logits = logits[:, :out_lanes]                   # (tile_m, out_lanes)
    m = jnp.max(logits, axis=-1, keepdims=True)
    e = jnp.exp(logits - m)
    denom = jnp.sum(e, axis=-1, keepdims=True)
    o_ref[...] = (e * pl.reciprocal(denom)).astype(o_ref.dtype)


def pack_params(params, action_size):
    """Pad each Linear to 128 lanes, bake the action mask into b3, and stack."""
    def pad_w(w):
        return jnp.pad(w, ((0, LANE - w.shape[0]), (0, LANE - w.shape[1])))

    def pad_b(b, fill=0.0):
        b = b.reshape(-1)
        return jnp.pad(b, (0, LANE - b.shape[0]), constant_values=fill)

    w_packed = jnp.stack(
        [pad_w(params["w1"]), pad_w(params["w2"]), pad_w(params["w3"])]
    ).astype(jnp.bfloat16)
    b_packed = jnp.stack([
        pad_b(params["b1"]),
        pad_b(params["b2"]),
        pad_b(params["b3"], fill=NEG_INF),   # padded action lanes -> prob 0
    ])
    b_packed = jnp.pad(b_packed, ((0, 8 - b_packed.shape[0]), (0, 0)))
    return w_packed, b_packed.astype(jnp.float32)


def policy_network_forward(x, w_packed, b_packed, action_size,
                           *, tile_m=DEFAULT_TILE_M):
    """x: (batch, state_size) f32 -> (batch, action_size) f32 softmax probs."""
    batch, state_size = x.shape
    assert state_size <= LANE and action_size <= LANE
    out_lanes = _round_up(action_size, 8)

    # Only needed when state_size isn't a sublane multiple (no-op for 24):
    # keeps the in-kernel w1 slice tile-aligned for arbitrary state sizes.
    state_pad = _round_up(state_size, 8)
    if state_pad != state_size:
        x = jnp.pad(x, ((0, 0), (0, state_pad - state_size)))

    # Tile selection: as large as possible (amortize ~0.35us/step overhead),
    # clamped to the batch, and capped so the grid has >=2 steps whenever
    # there is enough work for the "parallel" axis to feed both v7x TCs.
    tile_m = min(tile_m, _round_up(batch, 8))
    if batch >= 16:
        tile_m = min(tile_m, _round_up(pl.cdiv(batch, 2), 8))
    tile_m = max(tile_m, 8)

    grid = (pl.cdiv(batch, tile_m),)   # partial last block: OOB rows clipped

    kernel = functools.partial(policy_mlp_kernel,
                               state_pad=state_pad, out_lanes=out_lanes)

    out = pl.pallas_call(
        kernel,
        out_shape=jax.ShapeDtypeStruct((batch, out_lanes), jnp.float32),
        grid=grid,
        in_specs=[
            # batch-tiled activations (f32; cast to bf16 inside the kernel)
            pl.BlockSpec((tile_m, state_pad), lambda i: (i, 0)),
            # weights / biases: constant index_map -> VMEM-resident, no re-DMA
            pl.BlockSpec((3, LANE, LANE), lambda i: (0, 0, 0)),
            pl.BlockSpec((8, LANE), lambda i: (0, 0)),
        ],
        out_specs=pl.BlockSpec((tile_m, out_lanes), lambda i: (i, 0)),
        compiler_params=pltpu.CompilerParams(
            dimension_semantics=("parallel",),  # shard batch over v7x's 2 TCs
        ),
    )(x, w_packed, b_packed)

    return out[:, :action_size]


def init_params(key, state_size, action_size):
    """PyTorch-nn.Linear-like uniform fan-in init; weights stored (in, out)."""
    ks = jax.random.split(key, 6)

    def linear(kw, kb, fan_in, fan_out):
        bound = 1.0 / jnp.sqrt(jnp.float32(fan_in))
        w = jax.random.uniform(kw, (fan_in, fan_out), jnp.float32,
                               minval=-bound, maxval=bound)
        b = jax.random.uniform(kb, (fan_out,), jnp.float32,
                               minval=-bound, maxval=bound)
        return w, b

    w1, b1 = linear(ks[0], ks[1], state_size, 32)
    w2, b2 = linear(ks[2], ks[3], 32, 16)
    w3, b3 = linear(ks[4], ks[5], 16, action_size)
    return {"w1": w1, "b1": b1, "w2": w2, "b2": b2, "w3": w3, "b3": b3}


def reference_forward(x, params):
    """Pure-JAX f32 reference matching the PyTorch module."""
    h1 = jax.nn.relu(x @ params["w1"] + params["b1"])
    h2 = jax.nn.relu(h1 @ params["w2"] + params["b2"])
    return jax.nn.softmax(h2 @ params["w3"] + params["b3"], axis=-1)


if __name__ == "__main__":
    key = jax.random.PRNGKey(0)
    k_x, k_x2, k_p = jax.random.split(key, 3)

    state_size = 24
    action_size = 4
    params = init_params(k_p, state_size, action_size)
    w_packed, b_packed = pack_params(params, action_size)

    # Case 1: small batch (single grid step).
    batch = 8
    x = jax.random.normal(k_x, (batch, state_size), dtype=jnp.float32)
    out = jax.block_until_ready(
        policy_network_forward(x, w_packed, b_packed, action_size))
    ref = reference_forward(x, params)
    assert out.shape == (batch, action_size)
    assert bool(jnp.all(jnp.abs(jnp.sum(out, axis=-1) - 1.0) < 1e-3))
    assert bool(jnp.max(jnp.abs(out - ref)) < 5e-2)

    # Case 2: ragged batch with a multi-step grid (exercises the cdiv grid with
    # a partial last block, resident weights across steps, and the "parallel"
    # batch axis).
    batch2 = 50
    x2 = jax.random.normal(k_x2, (batch2, state_size), dtype=jnp.float32)
    out2 = jax.block_until_ready(
        policy_network_forward(x2, w_packed, b_packed, action_size, tile_m=16))
    ref2 = reference_forward(x2, params)
    assert out2.shape == (batch2, action_size)
    assert bool(jnp.all(jnp.abs(jnp.sum(out2, axis=-1) - 1.0) < 1e-3))
    assert bool(jnp.max(jnp.abs(out2 - ref2)) < 5e-2)

    print("KERNEL_OK")
</pallas_src>

<mosaic_0001>
module attributes {stable_mosaic.version = 11 : i64} {
  func.func @policy_mlp_kernel(%arg0: i32, %arg1: memref<8x24xf32, #tpu.memory_space<vmem>>, %arg2: memref<3x128x128xbf16, #tpu.memory_space<vmem>>, %arg3: memref<8x128xf32, #tpu.memory_space<vmem>>, %arg4: memref<8x8xf32, #tpu.memory_space<vmem>>) attributes {dimension_semantics = [#tpu.dimension_semantics<parallel>], iteration_bounds = array<i64: 1>, scalar_prefetch = 0 : i64, scratch_operands = 0 : i64, tpu.core_type = #tpu.core_type<tc>, window_params = [{transform_indices = @transform_0, window_bounds = array<i64: 8, 24>}, {pipeline_mode = #tpu.pipeline_mode<synchronous>, transform_indices = @transform_1, window_bounds = array<i64: 3, 128, 128>}, {pipeline_mode = #tpu.pipeline_mode<synchronous>, transform_indices = @transform_2, window_bounds = array<i64: 8, 128>}, {transform_indices = @transform_3, window_bounds = array<i64: 8, 8>}]} {
    %c0 = arith.constant 0 : index
    %c0_0 = arith.constant 0 : index
    %0 = vector.load %arg1[%c0, %c0_0] : memref<8x24xf32, #tpu.memory_space<vmem>>, vector<8x24xf32>
    %1 = arith.truncf %0 : vector<8x24xf32> to vector<8x24xbf16>
    %c0_1 = arith.constant 0 : index
    %c0_2 = arith.constant 0 : index
    %c0_3 = arith.constant 0 : index
    %2 = vector.load %arg2[%c0_1, %c0_2, %c0_3] : memref<3x128x128xbf16, #tpu.memory_space<vmem>>, vector<1x128x128xbf16>
    %3 = vector.shape_cast %2 : vector<1x128x128xbf16> to vector<128x128xbf16>
    %4 = vector.extract_strided_slice %3 {offsets = [0, 0], sizes = [24, 128], strides = [1, 1]} : vector<128x128xbf16> to vector<24x128xbf16>
    %c1 = arith.constant 1 : index
    %c0_4 = arith.constant 0 : index
    %c0_5 = arith.constant 0 : index
    %5 = vector.load %arg2[%c1, %c0_4, %c0_5] : memref<3x128x128xbf16, #tpu.memory_space<vmem>>, vector<1x128x128xbf16>
    %6 = vector.shape_cast %5 : vector<1x128x128xbf16> to vector<128x128xbf16>
    %c2 = arith.constant 2 : index
    %c0_6 = arith.constant 0 : index
    %c0_7 = arith.constant 0 : index
    %7 = vector.load %arg2[%c2, %c0_6, %c0_7] : memref<3x128x128xbf16, #tpu.memory_space<vmem>>, vector<1x128x128xbf16>
    %8 = vector.shape_cast %7 : vector<1x128x128xbf16> to vector<128x128xbf16>
    %c0_8 = arith.constant 0 : index
    %c0_9 = arith.constant 0 : index
    %9 = vector.load %arg3[%c0_8, %c0_9] : memref<8x128xf32, #tpu.memory_space<vmem>>, vector<8x128xf32>
    %10 = vector.extract_strided_slice %9 {offsets = [0, 0], sizes = [1, 128], strides = [1, 1]} : vector<8x128xf32> to vector<1x128xf32>
    %11 = vector.extract_strided_slice %9 {offsets = [1, 0], sizes = [1, 128], strides = [1, 1]} : vector<8x128xf32> to vector<1x128xf32>
    %12 = vector.extract_strided_slice %9 {offsets = [2, 0], sizes = [1, 128], strides = [1, 1]} : vector<8x128xf32> to vector<1x128xf32>
    %cst = arith.constant dense<0.000000e+00> : vector<8x128xf32>
    %13 = tpu.matmul %1, %4, %cst {dimension_numbers = #tpu.dot_dimension_numbers<[1], [0], [0], [1], [0, 0, 1, 1], [], []>} : vector<8x24xbf16>, vector<24x128xbf16>, vector<8x128xf32> -> vector<8x128xf32>
    %14 = vector.broadcast %10 : vector<1x128xf32> to vector<8x128xf32>
    %15 = arith.addf %13, %14 : vector<8x128xf32>
    %cst_10 = arith.constant 0.000000e+00 : f32
    %16 = vector.broadcast %cst_10 : f32 to vector<8x128xf32>
    %17 = arith.maximumf %15, %16 : vector<8x128xf32>
    %18 = arith.truncf %17 : vector<8x128xf32> to vector<8x128xbf16>
    %cst_11 = arith.constant dense<0.000000e+00> : vector<8x128xf32>
    %19 = tpu.matmul %18, %6, %cst_11 {dimension_numbers = #tpu.dot_dimension_numbers<[1], [0], [0], [1], [0, 0, 1, 1], [], []>} : vector<8x128xbf16>, vector<128x128xbf16>, vector<8x128xf32> -> vector<8x128xf32>
    %20 = vector.broadcast %11 : vector<1x128xf32> to vector<8x128xf32>
    %21 = arith.addf %19, %20 : vector<8x128xf32>
    %cst_12 = arith.constant 0.000000e+00 : f32
    %22 = vector.broadcast %cst_12 : f32 to vector<8x128xf32>
    %23 = arith.maximumf %21, %22 : vector<8x128xf32>
    %24 = arith.truncf %23 : vector<8x128xf32> to vector<8x128xbf16>
    %cst_13 = arith.constant dense<0.000000e+00> : vector<8x128xf32>
    %25 = tpu.matmul %24, %8, %cst_13 {dimension_numbers = #tpu.dot_dimension_numbers<[1], [0], [0], [1], [0, 0, 1, 1], [], []>} : vector<8x128xbf16>, vector<128x128xbf16>, vector<8x128xf32> -> vector<8x128xf32>
    %26 = vector.broadcast %12 : vector<1x128xf32> to vector<8x128xf32>
    %27 = arith.addf %25, %26 : vector<8x128xf32>
    %28 = vector.extract_strided_slice %27 {offsets = [0, 0], sizes = [8, 8], strides = [1, 1]} : vector<8x128xf32> to vector<8x8xf32>
    %cst_14 = arith.constant dense<0xFF800000> : vector<8xf32>
    %29 = vector.multi_reduction <maximumf>, %28, %cst_14 [1] : vector<8x8xf32> to vector<8xf32>
    %30 = vector.shape_cast %29 : vector<8xf32> to vector<8x1xf32>
    %31 = vector.broadcast %30 : vector<8x1xf32> to vector<8x8xf32>
    %32 = arith.subf %28, %31 : vector<8x8xf32>
    %33 = math.exp %32 : vector<8x8xf32>
    %cst_15 = arith.constant dense<0.000000e+00> : vector<8xf32>
    %34 = vector.multi_reduction <add>, %33, %cst_15 [1] : vector<8x8xf32> to vector<8xf32>
    %35 = vector.shape_cast %34 : vector<8xf32> to vector<8x1xf32>
    %36 = tpu.reciprocal %35 : vector<8x1xf32> -> vector<8x1xf32>
    %37 = vector.broadcast %36 : vector<8x1xf32> to vector<8x8xf32>
    %38 = arith.mulf %33, %37 : vector<8x8xf32>
    %c0_16 = arith.constant 0 : index
    %c0_17 = arith.constant 0 : index
    %39 = vector.load %arg4[%c0_16, %c0_17] : memref<8x8xf32, #tpu.memory_space<vmem>>, vector<8x8xf32>
    tpu.vector_store %arg4[%c0_16, %c0_17], %38 {strides = array<i32>} : memref<8x8xf32, #tpu.memory_space<vmem>>, vector<8x8xf32>,
    return
  }
  func.func @transform_0(%arg0: i32) -> (i32, i32) {
    %c0_i32 = arith.constant 0 : i32
    %c0_i32_0 = arith.constant 0 : i32
    return %arg0, %c0_i32 : i32, i32
  }
  func.func @transform_1(%arg0: i32) -> (i32, i32, i32) {
    %c0_i32 = arith.constant 0 : i32
    %c0_i32_0 = arith.constant 0 : i32
    %c0_i32_1 = arith.constant 0 : i32
    %c0_i32_2 = arith.constant 0 : i32
    return %c0_i32, %c0_i32_0, %c0_i32_1 : i32, i32, i32
  }
  func.func @transform_2(%arg0: i32) -> (i32, i32) {
    %c0_i32 = arith.constant 0 : i32
    %c0_i32_0 = arith.constant 0 : i32
    %c0_i32_1 = arith.constant 0 : i32
    return %c0_i32, %c0_i32_0 : i32, i32
  }
  func.func @transform_3(%arg0: i32) -> (i32, i32) {
    %c0_i32 = arith.constant 0 : i32
    %c0_i32_0 = arith.constant 0 : i32
    return %arg0, %c0_i32 : i32, i32
  }
}

</mosaic_0001>

<llo_original>
// kernel: tpu_custom_call.1
$region0: #{tpu_custom_call.1}
  #allocation0 [shape = 'u32[]', space=smem, size = 0x4, offset = 0x4, fixed_abs, tag = 'smem constant byte address 0x4 - core index']
  #allocation1 [shape = 'u32[144,128]{1,0:T(1,128)}', space=vmem, size = 0x12000, scoped, tag = 'internal scratch']
  %s0 = inlined_call_operand.hbm [shape: f32[8,24], index: 0, kind: input, shape index: {}]
  %s1 = inlined_call_operand.hbm [shape: bf16[3,128,128], index: 1, kind: input, shape index: {}]
  %s2 = inlined_call_operand.hbm [shape: f32[8,128], index: 2, kind: input, shape index: {}]
  %s3 = inlined_call_operand.hbm [shape: f32[8,8], index: 3, kind: output, shape index: {}]
  %s4 = sld [smem:[#allocation0]]
  $region34: #{tpu_custom_call.1} parent=0
    _
  %s6 = ssub.s32 1, %s4
  %s7 = scalar_select 0, %s6, %s4
  $region1: #{tpu_custom_call.1} parent=0
    #allocation2 [shape = 'u8[4096]{0}', space=vmem, size = 0x1000, scoped, tag = 'input window, operand 0, single buffered']
    #allocation3 [shape = 's32[1]{0}', space=sflag, size = 0x4, scoped, tag = 'scoped memory for tpu_custom_call.1']
    #allocation4 [shape = 's32[1]{0}', space=sflag, size = 0x4, scoped, tag = 'scoped memory for tpu_custom_call.1']
    #allocation5 [shape = 'u8[98304]{0}', space=vmem, size = 0x18000, scoped, tag = 'input window, operand 1, single buffered']
    #allocation6 [shape = 's32[1]{0}', space=sflag, size = 0x4, scoped, tag = 'scoped memory for tpu_custom_call.1']
    #allocation7 [shape = 'u8[4096]{0}', space=vmem, size = 0x1000, scoped, tag = 'input window, operand 2, single buffered']
    #allocation8 [shape = 'u8[4096]{0}', space=vmem, size = 0x1000, scoped, tag = 'output window, operand 0, single buffered']
    %8 = vsyncpa [#allocation3], 0
    %9 = vsyncpa [#allocation6], 0
    %10 = vsyncpa [#allocation4], 0
    // Predicated region
    $region2: #{tpu_custom_call.1} parent=1 // pred_check
      _
    $region3: #{tpu_custom_call.1} parent=1 // pred_check_branch
      %12 = sbr.rel (0) target = $region5
    $region4: #{tpu_custom_call.1} parent=1 // pred_region
      %s14 = ssub.s32 128, 128
      %15 = vsyncadd [#allocation3], %s14
      %s17 = sshll.u32 [#allocation2], 4
      %s18 = int_to_ptr.vmem [resolvable:$true] %s17
      %20 = dma.hbm_to_vmem [thread:$0]  %s0, 128, %s18, [#allocation3]
    $region5: #{tpu_custom_call.1} parent=1 // pred_fallthru
      _
    // Predicated region
    $region6: #{tpu_custom_call.1} parent=1 // pred_check
      _
    $region7: #{tpu_custom_call.1} parent=1 // pred_check_branch
      %22 = sbr.rel (0) target = $region9
    $region8: #{tpu_custom_call.1} parent=1 // pred_region
      %s24 = ssub.s32 3072, 3072
      %25 = vsyncadd [#allocation6], %s24
      %s26 = sshll.u32 [#allocation5], 4
      %s27 = int_to_ptr.vmem [resolvable:$true] %s26
      %32 = dma.hbm_to_vmem [thread:$0]  %s1, 3072, %s27, [#allocation6], 64, 64, 4
    $region9: #{tpu_custom_call.1} parent=1 // pred_fallthru
      _
    // Predicated region
    $region10: #{tpu_custom_call.1} parent=1 // pred_check
      _
    $region11: #{tpu_custom_call.1} parent=1 // pred_check_branch
      %34 = sbr.rel (0) target = $region13
    $region12: #{tpu_custom_call.1} parent=1 // pred_region
      %s36 = ssub.s32 128, 128
      %37 = vsyncadd [#allocation6], %s36
      %s39 = sshll.u32 [#allocation7], 4
      %s40 = int_to_ptr.vmem [resolvable:$true] %s39
      %42 = dma.hbm_to_vmem [thread:$0]  %s2, 128, %s40, [#allocation6]
    $region13: #{tpu_custom_call.1} parent=1 // pred_fallthru
      _
    // Predicated region
    $region14: #{tpu_custom_call.1} parent=1 // pred_check
      _
    $region15: #{tpu_custom_call.1} parent=1 // pred_check_branch
      %44 = sbr.rel (0) target = $region17
    $region16: #{tpu_custom_call.1} parent=1 // pred_region
      %45 = dma.done [#allocation3], 128
    $region17: #{tpu_custom_call.1} parent=1 // pred_fallthru
      _
    // Predicated region
    $region18: #{tpu_custom_call.1} parent=1 // pred_check
      _
    $region19: #{tpu_custom_call.1} parent=1 // pred_check_branch
      %47 = sbr.rel (0) target = $region21
    $region20: #{tpu_custom_call.1} parent=1 // pred_region
      %48 = dma.done [#allocation6], 3072
    $region21: #{tpu_custom_call.1} parent=1 // pred_fallthru
      _
    // Predicated region
    $region22: #{tpu_custom_call.1} parent=1 // pred_check
      _
    $region23: #{tpu_custom_call.1} parent=1 // pred_check_branch
      %50 = sbr.rel (0) target = $region25
    $region24: #{tpu_custom_call.1} parent=1 // pred_region
      %51 = dma.done [#allocation6], 128
    $region25: #{tpu_custom_call.1} parent=1 // pred_fallthru
      _
    %v53 = vld [vmem:[#allocation2] sm:$0xff]
    %v54 = vpack.c.bf16 %v53, %v53
    %v55 = vld [vmem:[#allocation5] sm:$0xf]
    %v56 = vld [vmem:[#allocation5 + $0x4] sm:$0xf]
    %v57 = vld [vmem:[#allocation5 + $0x8] sm:$0xf]
    %s58 = scalar_lea.vmem [#allocation5], 64
    %v59 = vld [vmem:[%s58] sm:$0xf]
    %v60 = vld [vmem:[%s58 + $0x4] sm:$0xf]
    %v61 = vld [vmem:[%s58 + $0x8] sm:$0xf]
    %v62 = vld [vmem:[%s58 + $0xc] sm:$0xf]
    %v63 = vld [vmem:[%s58 + $0x10] sm:$0xf]
    %v64 = vld [vmem:[%s58 + $0x14] sm:$0xf]
    %v65 = vld [vmem:[%s58 + $0x18] sm:$0xf]
    %v66 = vld [vmem:[%s58 + $0x1c] sm:$0xf]
    %v67 = vld [vmem:[%s58 + $0x20] sm:$0xf]
    %v68 = vld [vmem:[%s58 + $0x24] sm:$0xf]
    %v69 = vld [vmem:[%s58 + $0x28] sm:$0xf]
    %v70 = vld [vmem:[%s58 + $0x2c] sm:$0xf]
    %v71 = vld [vmem:[%s58 + $0x30] sm:$0xf]
    %v72 = vld [vmem:[%s58 + $0x34] sm:$0xf]
    %v73 = vld [vmem:[%s58 + $0x38] sm:$0xf]
    %v74 = vld [vmem:[%s58 + $0x3c] sm:$0xf]
    %s75 = scalar_lea.vmem [#allocation5], 128
    %v76 = vld [vmem:[%s75] sm:$0xf]
    %v77 = vld [vmem:[%s75 + $0x4] sm:$0xf]
    %v78 = vld [vmem:[%s75 + $0x8] sm:$0xf]
    %v79 = vld [vmem:[%s75 + $0xc] sm:$0xf]
    %v80 = vld [vmem:[%s75 + $0x10] sm:$0xf]
    %v81 = vld [vmem:[%s75 + $0x14] sm:$0xf]
    %v82 = vld [vmem:[%s75 + $0x18] sm:$0xf]
    %v83 = vld [vmem:[%s75 + $0x1c] sm:$0xf]
    %v84 = vld [vmem:[%s75 + $0x20] sm:$0xf]
    %v85 = vld [vmem:[%s75 + $0x24] sm:$0xf]
    %v86 = vld [vmem:[%s75 + $0x28] sm:$0xf]
    %v87 = vld [vmem:[%s75 + $0x2c] sm:$0xf]
    %v88 = vld [vmem:[%s75 + $0x30] sm:$0xf]
    %v89 = vld [vmem:[%s75 + $0x34] sm:$0xf]
    %v90 = vld [vmem:[%s75 + $0x38] sm:$0xf]
    %v91 = vld [vmem:[%s75 + $0x3c] sm:$0xf]
    %v92 = vld [vmem:[#allocation7] sm:$0xff]
    %v93 = vlaneseq
    %v94 = vshrl.u32 %v93, 7
    %v95 = vsub.s32 0, %v94
    %v96 = vrot.slane %v92, %v95
    %v100 = vunpack.c.l.b16 %v55
    %v101 = vunpack.c.l.b16 %v56
    %v102 = vunpack.c.l.b16 %v57
    %v103 = vpack.c.b16 %v101, %v100
    %v104 = vpack.c.b16 %v102, %v102
    %vm106 = vcmask 195584
    %v108 = vsel %vm106, %v54, 0
    %vm110 = vcmask 1043456
    %v112 = vsel %vm110, %v104, 0
    %114 = vmatprep.subr.bf16.mxu0 0
    %115 = vmatpush1.bf16.msra.mxu0 0
    %116 = vmatprep.subr.bf16.mxu0 0
    %117 = vmatpush1.bf16.msra.mxu0 0
    %118 = vmatprep.subr.bf16.mxu0 0
    %119 = vmatpush1.bf16.msra.mxu0 0
    %120 = vmatprep.subr.bf16.mxu0 0
    %121 = vmatpush1.bf16.msra.mxu0 0
    %122 = vmatprep.subr.bf16.mxu0 0
    %123 = vmatpush1.bf16.msra.mxu0 0
    %124 = vmatprep.subr.bf16.mxu0 0
    %125 = vmatpush1.bf16.msra.mxu0 0
    %126 = vmatprep.subr.bf16.mxu0 0
    %127 = vmatpush1.bf16.msra.mxu0 %v112
    %128 = vmatprep.subr.bf16.mxu0 0
    %129 = vmatpush1.bf16.msra.mxu0 %v103
    %130 = vmatprep.subr.bf16.mxu0 0
    %131 = vmatpush2.bf16.msra.mxu0 0
    %132 = vmatprep.subr.bf16.mxu0 0
    %133 = vmatpush2.bf16.msra.mxu0 0
    %134 = vmatprep.subr.bf16.mxu0 0
    %135 = vmatpush2.bf16.msra.mxu0 0
    %136 = vmatprep.subr.bf16.mxu0 0
    %137 = vmatpush2.bf16.msra.mxu0 0
    %138 = vmatprep.subr.bf16.mxu0 0
    %139 = vmatpush2.bf16.msra.mxu0 0
    %140 = vmatprep.subr.bf16.mxu0 0
    %141 = vmatpush2.bf16.msra.mxu0 0
    %142 = vmatprep.subr.bf16.mxu0 0
    %143 = vmatpush2.bf16.msra.mxu0 0
    %144 = vmatprep.subr.bf16.mxu0 0
    %145 = vmatpush2.bf16.msra.mxu0 0
    %146 = vmatprep.mubr.bf16.mxu0 0
    %147 = vmatmul.mubr.bf16.gmra.mxu0 %v108
    %v148 = vpop.f32.mrf.mxu0
    %v149 = vadd.f32 %v96, %v148
    %v150 = vpop.f32.mrf.mxu0
    %v151 = vpop.f32.mrf.mxu0
    %v152 = vpop.f32.mrf.mxu0
    %153 = vdwg.mxu0
    %v154 = vmax.f32 %v149, 0.0
    %v155 = vpack.c.bf16 %v154, %v154
    %v156 = vlaneseq
    %v157 = vshrl.u32 %v156, 7
    %v158 = vsub.s32 1, %v157
    %v159 = vrot.slane %v92, %v158
    %v176 = vunpack.c.l.b16 %v59
    %v177 = vunpack.c.l.b16 %v60
    %v178 = vunpack.c.l.b16 %v61
    %v179 = vunpack.c.l.b16 %v62
    %v180 = vunpack.c.l.b16 %v63
    %v181 = vunpack.c.l.b16 %v64
    %v182 = vunpack.c.l.b16 %v65
    %v183 = vunpack.c.l.b16 %v66
    %v184 = vunpack.c.l.b16 %v67
    %v185 = vunpack.c.l.b16 %v68
    %v186 = vunpack.c.l.b16 %v69
    %v187 = vunpack.c.l.b16 %v70
    %v188 = vunpack.c.l.b16 %v71
    %v189 = vunpack.c.l.b16 %v72
    %v190 = vunpack.c.l.b16 %v73
    %v191 = vunpack.c.l.b16 %v74
    %v192 = vpack.c.b16 %v177, %v176
    %v193 = vpack.c.b16 %v179, %v178
    %v194 = vpack.c.b16 %v181, %v180
    %v195 = vpack.c.b16 %v183, %v182
    %v196 = vpack.c.b16 %v185, %v184
    %v197 = vpack.c.b16 %v187, %v186
    %v198 = vpack.c.b16 %v189, %v188
    %v199 = vpack.c.b16 %v191, %v190
    %208 = vmatprep.subr.bf16.mxu0 0
    %209 = vmatpush1.bf16.msra.mxu0 %v199
    %210 = vmatprep.subr.bf16.mxu0 0
    %211 = vmatpush1.bf16.msra.mxu0 %v198
    %212 = vmatprep.subr.bf16.mxu0 0
    %213 = vmatpush1.bf16.msra.mxu0 %v197
    %214 = vmatprep.subr.bf16.mxu0 0
    %215 = vmatpush1.bf16.msra.mxu0 %v196
    %216 = vmatprep.subr.bf16.mxu0 0
    %217 = vmatpush1.bf16.msra.mxu0 %v195
    %218 = vmatprep.subr.bf16.mxu0 0
    %219 = vmatpush1.bf16.msra.mxu0 %v194
    %220 = vmatprep.subr.bf16.mxu0 0
    %221 = vmatpush1.bf16.msra.mxu0 %v193
    %222 = vmatprep.subr.bf16.mxu0 0
    %223 = vmatpush1.bf16.msra.mxu0 %v192
    %224 = vmatprep.subr.bf16.mxu0 0
    %225 = vmatpush2.bf16.msra.mxu0 0
    %226 = vmatprep.subr.bf16.mxu0 0
    %227 = vmatpush2.bf16.msra.mxu0 0
    %228 = vmatprep.subr.bf16.mxu0 0
    %229 = vmatpush2.bf16.msra.mxu0 0
    %230 = vmatprep.subr.bf16.mxu0 0
    %231 = vmatpush2.bf16.msra.mxu0 0
    %232 = vmatprep.subr.bf16.mxu0 0
    %233 = vmatpush2.bf16.msra.mxu0 0
    %234 = vmatprep.subr.bf16.mxu0 0
    %235 = vmatpush2.bf16.msra.mxu0 0
    %236 = vmatprep.subr.bf16.mxu0 0
    %237 = vmatpush2.bf16.msra.mxu0 0
    %238 = vmatprep.subr.bf16.mxu0 0
    %239 = vmatpush2.bf16.msra.mxu0 0
    %240 = vmatprep.mubr.bf16.mxu0 0
    %241 = vmatmul.mubr.bf16.gmra.mxu0 %v155
    %v242 = vpop.f32.mrf.mxu0
    %v243 = vadd.f32 %v159, %v242
    %v244 = vpop.f32.mrf.mxu0
    %v245 = vpop.f32.mrf.mxu0
    %v246 = vpop.f32.mrf.mxu0
    %247 = vdwg.mxu0
    %v248 = vmax.f32 %v243, 0.0
    %v249 = vpack.c.bf16 %v248, %v248
    %v250 = vlaneseq
    %v251 = vshrl.u32 %v250, 7
    %v252 = vsub.s32 2, %v251
    %v253 = vrot.slane %v92, %v252
    %v270 = vunpack.c.l.b16 %v76
    %v271 = vunpack.c.l.b16 %v77
    %v272 = vunpack.c.l.b16 %v78
    %v273 = vunpack.c.l.b16 %v79
    %v274 = vunpack.c.l.b16 %v80
    %v275 = vunpack.c.l.b16 %v81
    %v276 = vunpack.c.l.b16 %v82
    %v277 = vunpack.c.l.b16 %v83
    %v278 = vunpack.c.l.b16 %v84
    %v279 = vunpack.c.l.b16 %v85
    %v280 = vunpack.c.l.b16 %v86
    %v281 = vunpack.c.l.b16 %v87
    %v282 = vunpack.c.l.b16 %v88
    %v283 = vunpack.c.l.b16 %v89
    %v284 = vunpack.c.l.b16 %v90
    %v285 = vunpack.c.l.b16 %v91
    %v286 = vpack.c.b16 %v271, %v270
    %v287 = vpack.c.b16 %v273, %v272
    %v288 = vpack.c.b16 %v275, %v274
    %v289 = vpack.c.b16 %v277, %v276
    %v290 = vpack.c.b16 %v279, %v278
    %v291 = vpack.c.b16 %v281, %v280
    %v292 = vpack.c.b16 %v283, %v282
    %v293 = vpack.c.b16 %v285, %v284
    %302 = vmatprep.subr.bf16.mxu0 0
    %303 = vmatpush1.bf16.msra.mxu0 %v293
    %304 = vmatprep.subr.bf16.mxu0 0
    %305 = vmatpush1.bf16.msra.mxu0 %v292
    %306 = vmatprep.subr.bf16.mxu0 0
    %307 = vmatpush1.bf16.msra.mxu0 %v291
    %308 = vmatprep.subr.bf16.mxu0 0
    %309 = vmatpush1.bf16.msra.mxu0 %v290
    %310 = vmatprep.subr.bf16.mxu0 0
    %311 = vmatpush1.bf16.msra.mxu0 %v289
    %312 = vmatprep.subr.bf16.mxu0 0
    %313 = vmatpush1.bf16.msra.mxu0 %v288
    %314 = vmatprep.subr.bf16.mxu0 0
    %315 = vmatpush1.bf16.msra.mxu0 %v287
    %316 = vmatprep.subr.bf16.mxu0 0
    %317 = vmatpush1.bf16.msra.mxu0 %v286
    %318 = vmatprep.subr.bf16.mxu0 0
    %319 = vmatpush2.bf16.msra.mxu0 0
    %320 = vmatprep.subr.bf16.mxu0 0
    %321 = vmatpush2.bf16.msra.mxu0 0
    %322 = vmatprep.subr.bf16.mxu0 0
    %323 = vmatpush2.bf16.msra.mxu0 0
    %324 = vmatprep.subr.bf16.mxu0 0
    %325 = vmatpush2.bf16.msra.mxu0 0
    %326 = vmatprep.subr.bf16.mxu0 0
    %327 = vmatpush2.bf16.msra.mxu0 0
    %328 = vmatprep.subr.bf16.mxu0 0
    %329 = vmatpush2.bf16.msra.mxu0 0
    %330 = vmatprep.subr.bf16.mxu0 0
    %331 = vmatpush2.bf16.msra.mxu0 0
    %332 = vmatprep.subr.bf16.mxu0 0
    %333 = vmatpush2.bf16.msra.mxu0 0
    %334 = vmatprep.mubr.bf16.mxu0 0
    %335 = vmatmul.mubr.bf16.gmra.mxu0 %v249
    %v336 = vpop.f32.mrf.mxu0
    %v337 = vadd.f32 %v253, %v336
    %v338 = vpop.f32.mrf.mxu0
    %v339 = vpop.f32.mrf.mxu0
    %v340 = vpop.f32.mrf.mxu0
    %341 = vdwg.mxu0
    %vm342 = vcmask 64512
    %v343 = vsel %vm342, %v337, -inf
    %344 = vmax.xlane.f32.xlu0 %v343
    %v345 = vpop.xlane.xlu0 %344
    %v346 = vsub.f32 %v337, %v345
    %v347 = vmul.f32 %v346, 1.442695
    %v348 = vpow.pop %v347
    %v349 = vsel %vm342, %v348, 0.0
    %350 = vadd.xlane.f32.xlu0 %v349
    %v351 = vpop.xlane.xlu0 %350
    %v352 = vrcp.pop %v351
    %v353 = vmul.f32 %v348, %v352
    %354 = vst.msk [vmem:[#allocation8] sm:$0xff] %vm342, %v353
    // Predicated region
    $region26: #{tpu_custom_call.1} parent=1 // pred_check
      _
    $region27: #{tpu_custom_call.1} parent=1 // pred_check_branch
      %356 = sbr.rel (0) target = $region29
    $region28: #{tpu_custom_call.1} parent=1 // pred_region
      %s358 = ssub.s32 128, 128
      %359 = vsyncadd [#allocation4], %s358
      %s361 = sshll.u32 [#allocation8], 4
      %s362 = int_to_ptr.vmem [resolvable:$true] %s361
      %364 = dma.vmem_to_hbm [thread:$0]  %s362, 128, %s3, [#allocation4]
    $region29: #{tpu_custom_call.1} parent=1 // pred_fallthru
      _
    // Predicated region
    $region30: #{tpu_custom_call.1} parent=1 // pred_check
      _
    $region31: #{tpu_custom_call.1} parent=1 // pred_check_branch
      %366 = sbr.rel (0) target = $region33
    $region32: #{tpu_custom_call.1} parent=1 // pred_region
      %367 = dma.done [#allocation4], 128
    $region33: #{tpu_custom_call.1} parent=1 // pred_fallthru
      _
    %368 = vsyncpa [#allocation3], 1
    %369 = vsyncpa [#allocation6], 1
    %370 = vsyncpa [#allocation4], 1

</llo_original>
